<compile_context>
chip_gen: v7x
topology: tpu7x:2x2x1
jax: 0.10.0
libtpu: 0.0.40
codegen_flags: <defaults>
</compile_context>

<pallas_src>
import math

import jax
import jax.numpy as jnp
from jax.experimental import pallas as pl
from jax.experimental.pallas import tpu as pltpu

NUM_CLASSES = 9                                  # label-set size
BITS = int(math.ceil(math.log2(NUM_CLASSES)))    # ceil(log2(9)) = 4 (matches module)
SNR_SCALE = 1.0
DIM_MODEL = 32
HIDDEN = 32
VOCAB = 64
COSINE_S = 0.008


# ----------------------------- schedule glue (B scalars) -----------------------------
def alpha_cosine_log_snr(t, s=COSINE_S):
    c = jnp.cos((t + s) / (1.0 + s) * math.pi * 0.5)
    return -jnp.log(jnp.maximum(c ** (-2) - 1.0, 1e-5))


# ----------------------------- fused Pallas kernel -----------------------------
def _fused_train_kernel(labels_ref, noise_ref, feat_ref, alpha_ref, sigma_ref,
                        cond_ref, bitmask_ref, w_in_ref, w_feat_ref,
                        w_out_ref, b_out_ref, sum_ref, acc_ref):
    i = pl.program_id(0)

    @pl.when(i == 0)
    def _():
        acc_ref[0] = 0.0

    labels = labels_ref[...]                                    # (T, 1) int32

    # decimal_to_bits: MSB-first bits -> {-1,+1} * snr_scale (bitmask is a constant input)
    bit_on = jnp.bitwise_and(labels, bitmask_ref[...]) != 0     # (T,1)&(1,BITS) -> (T,BITS)
    bits = jnp.where(bit_on, SNR_SCALE, -SNR_SCALE)             # f32 (T, BITS)

    # q_sample: noised = alpha * x0 + sigma * eps  (alpha/sigma precomputed per row)
    noised = alpha_ref[...] * bits + sigma_ref[...] * noise_ref[...]

    # predictor stand-in (real DiT/BERT are external modules): conditioned projection.
    # Rank-1 time term (log_snr @ w_t) is hoisted into cond_ref as a bias.
    h = (jnp.dot(noised, w_in_ref[...], preferred_element_type=jnp.float32)
         + jnp.dot(feat_ref[...], w_feat_ref[...], preferred_element_type=jnp.float32)
         + cond_ref[...])
    h = jax.nn.gelu(h)
    pred = (jnp.dot(h, w_out_ref[...], preferred_element_type=jnp.float32)
            + b_out_ref[...])                                    # (T, BITS)

    # objective == 'pred_x0', loss_type == 'l2': masked squared-error partial sum.
    # (denominator / count is computed in JAX glue from seq_labels only)
    mask = (labels != -100).astype(jnp.float32)                  # (T, 1)
    diff = (pred - bits) * mask
    acc_ref[0] += jnp.sum(diff * diff)

    @pl.when(i == pl.num_programs(0) - 1)
    def _():
        sum_ref[0, 0] = acc_ref[0]


# ----------------------------- pallas_call wrapper -----------------------------
def _row_tile(rows):
    # Biggest row tile that divides R, capped so blocks stay well under VMEM budget
    # on every generation (v7x: 64 MiB physical).  TODO(synk): re-derive the cap for
    # a real BERT backbone (H=768) and bf16 MXU operands on v6e/v7x.
    for cand in (2048, 1024, 512, 256, 128, 64, 32, 16, 8):
        if rows % cand == 0 and rows >= cand:
            return cand
    return rows


def fused_loss_call(seq_labels, noise, features, alpha, sigma, t_bias, params):
    B, L = seq_labels.shape
    R = B * L
    T = _row_tile(R)
    grid = (R // T,)

    labels2d = seq_labels.reshape(R, 1).astype(jnp.int32)
    noise2d = noise.reshape(R, BITS).astype(jnp.float32)
    feat2d = features.reshape(R, HIDDEN).astype(jnp.float32)
    alpha2d = jnp.repeat(alpha.astype(jnp.float32), L).reshape(R, 1)
    sigma2d = jnp.repeat(sigma.astype(jnp.float32), L).reshape(R, 1)
    cond2d = jnp.repeat(t_bias.astype(jnp.float32), L, axis=0)       # (R, DIM_MODEL)
    bitmask = jnp.left_shift(
        jnp.int32(1), (BITS - 1) - jnp.arange(BITS, dtype=jnp.int32)).reshape(1, BITS)

    def row_spec(width):
        return pl.BlockSpec((T, width), lambda i: (i, 0))

    def const_spec(shape):
        # constant block index -> weights/constants stay VMEM-resident across grid steps
        return pl.BlockSpec(shape, lambda i: (0, 0))

    sq_sum = pl.pallas_call(
        _fused_train_kernel,
        out_shape=jax.ShapeDtypeStruct((1, 1), jnp.float32),
        grid=grid,
        in_specs=[
            row_spec(1),                       # labels
            row_spec(BITS),                    # noise
            row_spec(HIDDEN),                  # features
            row_spec(1),                       # alpha
            row_spec(1),                       # sigma
            row_spec(DIM_MODEL),               # time-conditioning bias
            const_spec((1, BITS)),             # bitmask
            const_spec((BITS, DIM_MODEL)),     # w_in
            const_spec((HIDDEN, DIM_MODEL)),   # w_feat
            const_spec((DIM_MODEL, BITS)),     # w_out
            const_spec((1, BITS)),             # b_out
        ],
        out_specs=pl.BlockSpec(memory_space=pltpu.MemorySpace.SMEM),
        scratch_shapes=[pltpu.SMEM((1,), jnp.float32)],
        compiler_params=pltpu.CompilerParams(
            dimension_semantics=("arbitrary",),      # loss sum is reduced over row tiles
            vmem_limit_bytes=32 * 1024 * 1024,
        ),
    )(labels2d, noise2d, feat2d, alpha2d, sigma2d, cond2d, bitmask,
      params['w_in'], params['w_feat'], params['w_out'], params['b_out'])
    return sq_sum[0, 0]


# ----------------------------- forward (training branch) -----------------------------
@jax.jit
def forward_train(params, input_ids, attention_mask, seq_labels, key_t, key_n):
    B, L = input_ids.shape
    # TODO(synk): real BERT backbone (AutoModel.from_pretrained) is an external module;
    # stand-in is a deterministic embedding lookup masked by attention_mask.
    features = params['emb'][input_ids] * attention_mask[..., None].astype(jnp.float32)

    times = jax.random.uniform(key_t, (B,), jnp.float32)            # .uniform_(0, 1.0)
    noise = jax.random.normal(key_n, (B, L, BITS), jnp.float32)     # randn_like(bits)
    log_snr = alpha_cosine_log_snr(times)                           # (B,)

    # log_snr_to_alpha_sigma hoisted out of the kernel (B scalars)
    alpha = jnp.sqrt(jax.nn.sigmoid(log_snr))
    sigma = jnp.sqrt(jax.nn.sigmoid(-log_snr))
    # rank-1 time conditioning hoisted out of the MXU: t @ w_t == log_snr * w_t[0]
    t_bias = log_snr[:, None] * params['w_t']                       # (B, DIM_MODEL)

    sq_sum = fused_loss_call(seq_labels, noise, features, alpha, sigma, t_bias, params)

    # masked-mean denominator + divide-by-zero guard (depends only on labels)
    cnt = jnp.sum(seq_labels != -100).astype(jnp.float32) * float(BITS)
    return jnp.where(cnt > 0, sq_sum / jnp.maximum(cnt, 1.0), 0.0)


# ----------------------------- main -----------------------------
if __name__ == "__main__":
    key = jax.random.PRNGKey(0)
    (k_ids, k_lab, k_emb, k_win, k_wf, k_wt, k_wo, k_time, k_noise) = jax.random.split(key, 9)

    B, L = 2, 8
    input_ids = jax.random.randint(k_ids, (B, L), 0, VOCAB, dtype=jnp.int32)
    attention_mask = jnp.ones((B, L), jnp.int32).at[1, L - 2:].set(0)
    seq_labels = jax.random.randint(k_lab, (B, L), 0, NUM_CLASSES, dtype=jnp.int32)
    seq_labels = jnp.where(attention_mask == 0, jnp.int32(-100), seq_labels)

    params = {
        'emb':    0.02 * jax.random.normal(k_emb, (VOCAB, HIDDEN), jnp.float32),
        'w_in':   0.10 * jax.random.normal(k_win, (BITS, DIM_MODEL), jnp.float32),
        'w_feat': 0.10 * jax.random.normal(k_wf, (HIDDEN, DIM_MODEL), jnp.float32),
        'w_t':    0.10 * jax.random.normal(k_wt, (1, DIM_MODEL), jnp.float32),
        'w_out':  0.10 * jax.random.normal(k_wo, (DIM_MODEL, BITS), jnp.float32),
        'b_out':  jnp.zeros((1, BITS), jnp.float32),
    }

    loss = forward_train(params, input_ids, attention_mask, seq_labels, k_time, k_noise)
    jax.block_until_ready(loss)
    assert loss.shape == () and bool(jnp.isfinite(loss))
    print("KERNEL_OK")
</pallas_src>

<mosaic_0001>
module attributes {stable_mosaic.version = 11 : i64} {
  func.func @_fused_train_kernel(%arg0: i32, %arg1: memref<16x1xi32, #tpu.memory_space<vmem>>, %arg2: memref<16x4xf32, #tpu.memory_space<vmem>>, %arg3: memref<16x32xf32, #tpu.memory_space<vmem>>, %arg4: memref<16x1xf32, #tpu.memory_space<vmem>>, %arg5: memref<16x1xf32, #tpu.memory_space<vmem>>, %arg6: memref<16x32xf32, #tpu.memory_space<vmem>>, %arg7: memref<1x4xi32, #tpu.memory_space<vmem>>, %arg8: memref<4x32xf32, #tpu.memory_space<vmem>>, %arg9: memref<32x32xf32, #tpu.memory_space<vmem>>, %arg10: memref<32x4xf32, #tpu.memory_space<vmem>>, %arg11: memref<1x4xf32, #tpu.memory_space<vmem>>, %arg12: memref<1x1xf32, #tpu.memory_space<smem>>, %arg13: memref<1xf32, #tpu.memory_space<smem>>) attributes {dimension_semantics = [#tpu.dimension_semantics<arbitrary>], iteration_bounds = array<i64: 1>, scalar_prefetch = 0 : i64, scratch_operands = 1 : i64, tpu.core_type = #tpu.core_type<tc>, window_params = [{transform_indices = @transform_0, window_bounds = array<i64: 16, 1>}, {transform_indices = @transform_1, window_bounds = array<i64: 16, 4>}, {transform_indices = @transform_2, window_bounds = array<i64: 16, 32>}, {transform_indices = @transform_3, window_bounds = array<i64: 16, 1>}, {transform_indices = @transform_4, window_bounds = array<i64: 16, 1>}, {transform_indices = @transform_5, window_bounds = array<i64: 16, 32>}, {pipeline_mode = #tpu.pipeline_mode<synchronous>, transform_indices = @transform_6, window_bounds = array<i64: 1, 4>}, {pipeline_mode = #tpu.pipeline_mode<synchronous>, transform_indices = @transform_7, window_bounds = array<i64: 4, 32>}, {pipeline_mode = #tpu.pipeline_mode<synchronous>, transform_indices = @transform_8, window_bounds = array<i64: 32, 32>}, {pipeline_mode = #tpu.pipeline_mode<synchronous>, transform_indices = @transform_9, window_bounds = array<i64: 32, 4>}, {pipeline_mode = #tpu.pipeline_mode<synchronous>, transform_indices = @transform_10, window_bounds = array<i64: 1, 4>}, {transform_indices = @transform_11, window_bounds = array<i64: 1, 1>}]} {
    %c0_i32 = arith.constant 0 : i32
    %0 = arith.cmpi eq, %arg0, %c0_i32 : i32
    %1 = arith.extui %0 : i1 to i32
    %c0_i32_0 = arith.constant 0 : i32
    %2 = arith.cmpi ne, %1, %c0_i32_0 : i32
    scf.if %2 {
      %cst_36 = arith.constant 0.000000e+00 : f32
      %c0_37 = arith.constant 0 : index
      %65 = memref.load %arg13[%c0_37] : memref<1xf32, #tpu.memory_space<smem>>
      memref.store %cst_36, %arg13[%c0_37] : memref<1xf32, #tpu.memory_space<smem>>
    } else {
    }
    %c0 = arith.constant 0 : index
    %c0_1 = arith.constant 0 : index
    %3 = vector.load %arg1[%c0, %c0_1] : memref<16x1xi32, #tpu.memory_space<vmem>>, vector<16x1xi32>
    %c0_2 = arith.constant 0 : index
    %c0_3 = arith.constant 0 : index
    %4 = vector.load %arg7[%c0_2, %c0_3] : memref<1x4xi32, #tpu.memory_space<vmem>>, vector<1x4xi32>
    %5 = vector.broadcast %3 : vector<16x1xi32> to vector<16x4xi32>
    %6 = vector.broadcast %4 : vector<1x4xi32> to vector<16x4xi32>
    %7 = arith.andi %5, %6 : vector<16x4xi32>
    %c0_i32_4 = arith.constant 0 : i32
    %8 = vector.broadcast %c0_i32_4 : i32 to vector<16x4xi32>
    %9 = arith.cmpi ne, %7, %8 : vector<16x4xi32>
    %cst = arith.constant 1.000000e+00 : f32
    %cst_5 = arith.constant -1.000000e+00 : f32
    %10 = vector.broadcast %cst : f32 to vector<16x4xf32>
    %11 = vector.broadcast %cst_5 : f32 to vector<16x4xf32>
    %12 = arith.select %9, %10, %11 : vector<16x4xi1>, vector<16x4xf32>
    %c0_6 = arith.constant 0 : index
    %c0_7 = arith.constant 0 : index
    %13 = vector.load %arg4[%c0_6, %c0_7] : memref<16x1xf32, #tpu.memory_space<vmem>>, vector<16x1xf32>
    %14 = vector.broadcast %13 : vector<16x1xf32> to vector<16x4xf32>
    %15 = arith.mulf %14, %12 : vector<16x4xf32>
    %c0_8 = arith.constant 0 : index
    %c0_9 = arith.constant 0 : index
    %16 = vector.load %arg5[%c0_8, %c0_9] : memref<16x1xf32, #tpu.memory_space<vmem>>, vector<16x1xf32>
    %c0_10 = arith.constant 0 : index
    %c0_11 = arith.constant 0 : index
    %17 = vector.load %arg2[%c0_10, %c0_11] : memref<16x4xf32, #tpu.memory_space<vmem>>, vector<16x4xf32>
    %18 = vector.broadcast %16 : vector<16x1xf32> to vector<16x4xf32>
    %19 = arith.mulf %18, %17 : vector<16x4xf32>
    %20 = arith.addf %15, %19 : vector<16x4xf32>
    %c0_12 = arith.constant 0 : index
    %c0_13 = arith.constant 0 : index
    %21 = vector.load %arg8[%c0_12, %c0_13] : memref<4x32xf32, #tpu.memory_space<vmem>>, vector<4x32xf32>
    %cst_14 = arith.constant dense<0.000000e+00> : vector<16x32xf32>
    %22 = tpu.matmul %20, %21, %cst_14 {dimension_numbers = #tpu.dot_dimension_numbers<[1], [0], [0], [1], [0, 0, 1, 1], [], []>} : vector<16x4xf32>, vector<4x32xf32>, vector<16x32xf32> -> vector<16x32xf32>
    %c0_15 = arith.constant 0 : index
    %c0_16 = arith.constant 0 : index
    %23 = vector.load %arg3[%c0_15, %c0_16] : memref<16x32xf32, #tpu.memory_space<vmem>>, vector<16x32xf32>
    %c0_17 = arith.constant 0 : index
    %c0_18 = arith.constant 0 : index
    %24 = vector.load %arg9[%c0_17, %c0_18] : memref<32x32xf32, #tpu.memory_space<vmem>>, vector<32x32xf32>
    %cst_19 = arith.constant dense<0.000000e+00> : vector<16x32xf32>
    %25 = tpu.matmul %23, %24, %cst_19 {dimension_numbers = #tpu.dot_dimension_numbers<[1], [0], [0], [1], [0, 0, 1, 1], [], []>} : vector<16x32xf32>, vector<32x32xf32>, vector<16x32xf32> -> vector<16x32xf32>
    %26 = arith.addf %22, %25 : vector<16x32xf32>
    %c0_20 = arith.constant 0 : index
    %c0_21 = arith.constant 0 : index
    %27 = vector.load %arg6[%c0_20, %c0_21] : memref<16x32xf32, #tpu.memory_space<vmem>>, vector<16x32xf32>
    %28 = arith.addf %26, %27 : vector<16x32xf32>
    %29 = arith.mulf %28, %28 : vector<16x32xf32>
    %30 = arith.mulf %28, %29 : vector<16x32xf32>
    %cst_22 = arith.constant 4.471500e-02 : f32
    %31 = vector.broadcast %cst_22 : f32 to vector<16x32xf32>
    %32 = arith.mulf %31, %30 : vector<16x32xf32>
    %33 = arith.addf %28, %32 : vector<16x32xf32>
    %cst_23 = arith.constant 0.797884583 : f32
    %34 = vector.broadcast %cst_23 : f32 to vector<16x32xf32>
    %35 = arith.mulf %34, %33 : vector<16x32xf32>
    %36 = math.tanh %35 : vector<16x32xf32>
    %cst_24 = arith.constant 1.000000e+00 : f32
    %37 = vector.broadcast %cst_24 : f32 to vector<16x32xf32>
    %38 = arith.addf %37, %36 : vector<16x32xf32>
    %cst_25 = arith.constant 5.000000e-01 : f32
    %39 = vector.broadcast %cst_25 : f32 to vector<16x32xf32>
    %40 = arith.mulf %39, %38 : vector<16x32xf32>
    %41 = arith.mulf %28, %40 : vector<16x32xf32>
    %c0_26 = arith.constant 0 : index
    %c0_27 = arith.constant 0 : index
    %42 = vector.load %arg10[%c0_26, %c0_27] : memref<32x4xf32, #tpu.memory_space<vmem>>, vector<32x4xf32>
    %cst_28 = arith.constant dense<0.000000e+00> : vector<16x4xf32>
    %43 = tpu.matmul %41, %42, %cst_28 {dimension_numbers = #tpu.dot_dimension_numbers<[1], [0], [0], [1], [0, 0, 1, 1], [], []>} : vector<16x32xf32>, vector<32x4xf32>, vector<16x4xf32> -> vector<16x4xf32>
    %c0_29 = arith.constant 0 : index
    %c0_30 = arith.constant 0 : index
    %44 = vector.load %arg11[%c0_29, %c0_30] : memref<1x4xf32, #tpu.memory_space<vmem>>, vector<1x4xf32>
    %45 = vector.broadcast %44 : vector<1x4xf32> to vector<16x4xf32>
    %46 = arith.addf %43, %45 : vector<16x4xf32>
    %c-100_i32 = arith.constant -100 : i32
    %47 = vector.broadcast %c-100_i32 : i32 to vector<16x1xi32>
    %48 = arith.cmpi ne, %3, %47 : vector<16x1xi32>
    %49 = arith.extui %48 : vector<16x1xi1> to vector<16x1xi32>
    %50 = arith.sitofp %49 : vector<16x1xi32> to vector<16x1xf32>
    %51 = arith.subf %46, %12 : vector<16x4xf32>
    %52 = vector.broadcast %50 : vector<16x1xf32> to vector<16x4xf32>
    %53 = arith.mulf %51, %52 : vector<16x4xf32>
    %c0_31 = arith.constant 0 : index
    %54 = memref.load %arg13[%c0_31] : memref<1xf32, #tpu.memory_space<smem>>
    %55 = arith.mulf %53, %53 : vector<16x4xf32>
    %56 = vector.shape_cast %55 : vector<16x4xf32> to vector<1x16x4xf32>
    %cst_32 = arith.constant dense<0.000000e+00> : vector<1xf32>
    %57 = vector.multi_reduction <add>, %56, %cst_32 [1, 2] : vector<1x16x4xf32> to vector<1xf32>
    %58 = vector.shape_cast %57 : vector<1xf32> to vector<1x1x1xf32>
    %59 = vector.extract %58[0, 0, 0] : f32 from vector<1x1x1xf32>
    %60 = arith.addf %54, %59 : f32
    %c0_33 = arith.constant 0 : index
    %61 = memref.load %arg13[%c0_33] : memref<1xf32, #tpu.memory_space<smem>>
    memref.store %60, %arg13[%c0_33] : memref<1xf32, #tpu.memory_space<smem>>
    %c0_i32_34 = arith.constant 0 : i32
    %62 = arith.cmpi eq, %arg0, %c0_i32_34 : i32
    %63 = arith.extui %62 : i1 to i32
    %c0_i32_35 = arith.constant 0 : i32
    %64 = arith.cmpi ne, %63, %c0_i32_35 : i32
    scf.if %64 {
      %c0_36 = arith.constant 0 : index
      %65 = memref.load %arg13[%c0_36] : memref<1xf32, #tpu.memory_space<smem>>
      %c0_37 = arith.constant 0 : index
      %c0_38 = arith.constant 0 : index
      %66 = memref.load %arg12[%c0_37, %c0_38] : memref<1x1xf32, #tpu.memory_space<smem>>
      memref.store %65, %arg12[%c0_37, %c0_38] : memref<1x1xf32, #tpu.memory_space<smem>>
    } else {
    }
    return
  }
  func.func @transform_0(%arg0: i32) -> (i32, i32) {
    %c0_i32 = arith.constant 0 : i32
    %c0_i32_0 = arith.constant 0 : i32
    return %arg0, %c0_i32 : i32, i32
  }
  func.func @transform_1(%arg0: i32) -> (i32, i32) {
    %c0_i32 = arith.constant 0 : i32
    %c0_i32_0 = arith.constant 0 : i32
    return %arg0, %c0_i32 : i32, i32
  }
  func.func @transform_2(%arg0: i32) -> (i32, i32) {
    %c0_i32 = arith.constant 0 : i32
    %c0_i32_0 = arith.constant 0 : i32
    return %arg0, %c0_i32 : i32, i32
  }
  func.func @transform_3(%arg0: i32) -> (i32, i32) {
    %c0_i32 = arith.constant 0 : i32
    %c0_i32_0 = arith.constant 0 : i32
    return %arg0, %c0_i32 : i32, i32
  }
  func.func @transform_4(%arg0: i32) -> (i32, i32) {
    %c0_i32 = arith.constant 0 : i32
    %c0_i32_0 = arith.constant 0 : i32
    return %arg0, %c0_i32 : i32, i32
  }
  func.func @transform_5(%arg0: i32) -> (i32, i32) {
    %c0_i32 = arith.constant 0 : i32
    %c0_i32_0 = arith.constant 0 : i32
    return %arg0, %c0_i32 : i32, i32
  }
  func.func @transform_6(%arg0: i32) -> (i32, i32) {
    %c0_i32 = arith.constant 0 : i32
    %c0_i32_0 = arith.constant 0 : i32
    %c0_i32_1 = arith.constant 0 : i32
    return %c0_i32, %c0_i32_0 : i32, i32
  }
  func.func @transform_7(%arg0: i32) -> (i32, i32) {
    %c0_i32 = arith.constant 0 : i32
    %c0_i32_0 = arith.constant 0 : i32
    %c0_i32_1 = arith.constant 0 : i32
    return %c0_i32, %c0_i32_0 : i32, i32
  }
  func.func @transform_8(%arg0: i32) -> (i32, i32) {
    %c0_i32 = arith.constant 0 : i32
    %c0_i32_0 = arith.constant 0 : i32
    %c0_i32_1 = arith.constant 0 : i32
    return %c0_i32, %c0_i32_0 : i32, i32
  }
  func.func @transform_9(%arg0: i32) -> (i32, i32) {
    %c0_i32 = arith.constant 0 : i32
    %c0_i32_0 = arith.constant 0 : i32
    %c0_i32_1 = arith.constant 0 : i32
    return %c0_i32, %c0_i32_0 : i32, i32
  }
  func.func @transform_10(%arg0: i32) -> (i32, i32) {
    %c0_i32 = arith.constant 0 : i32
    %c0_i32_0 = arith.constant 0 : i32
    %c0_i32_1 = arith.constant 0 : i32
    return %c0_i32, %c0_i32_0 : i32, i32
  }
  func.func @transform_11(%arg0: i32) -> (i32, i32) {
    %c0_i32 = arith.constant 0 : i32
    %c0_i32_0 = arith.constant 0 : i32
    %c0_i32_1 = arith.constant 0 : i32
    return %c0_i32, %c0_i32_0 : i32, i32
  }
}

</mosaic_0001>

<llo_original>
// kernel: forward_train.1
$region0: #{forward_train.1}
  #allocation0 [shape = 'u32[]', space=smem, size = 0x4, offset = 0x4, fixed_abs, tag = 'smem constant byte address 0x4 - core index']
  #allocation1 [shape = 'u32[144,128]{1,0:T(1,128)}', space=vmem, size = 0x12000, scoped, tag = 'internal scratch']
  #allocation2 [shape = 'f32[1]{0:T(128)}', space=smem, size = 0x200, scoped, tag = 'scratch operand']
  %s0 = inlined_call_operand.vmem [shape: s32[16,1], index: 0, kind: input, shape index: {}]
  %s1 = inlined_call_operand.vmem [shape: f32[16,4], index: 1, kind: input, shape index: {}]
  %s2 = inlined_call_operand.vmem [shape: f32[16,32], index: 2, kind: input, shape index: {}]
  %s3 = inlined_call_operand.vmem [shape: f32[16,1], index: 3, kind: input, shape index: {}]
  %s4 = inlined_call_operand.vmem [shape: f32[16,1], index: 4, kind: input, shape index: {}]
  %s5 = inlined_call_operand.vmem [shape: f32[16,32], index: 5, kind: input, shape index: {}]
  %s6 = inlined_call_operand.vmem [shape: s32[1,4], index: 6, kind: input, shape index: {}]
  %s7 = inlined_call_operand.vmem [shape: f32[4,32], index: 7, kind: input, shape index: {}]
  %s8 = inlined_call_operand.vmem [shape: f32[32,32], index: 8, kind: input, shape index: {}]
  %s9 = inlined_call_operand.vmem [shape: f32[32,4], index: 9, kind: input, shape index: {}]
  %s10 = inlined_call_operand.vmem [shape: f32[1,4], index: 10, kind: input, shape index: {}]
  %s11 = inlined_call_operand.hbm [shape: f32[1,1], index: 11, kind: output, shape index: {}]
  %s12 = sld [smem:[#allocation0]]
  $region62: #{forward_train.1} parent=0
    _
  %s14 = ssub.s32 1, %s12
  %s15 = scalar_select 0, %s14, %s12
  $region1: #{forward_train.1} parent=0
    #allocation3 [shape = 'u8[512]{0}', space=smem, size = 0x200, scoped, tag = 'output window, operand 0, single buffered']
    #allocation4 [shape = 's32[1]{0}', space=sflag, size = 0x4, scoped, tag = 'scoped memory for forward_train.1']
    %16 = vsyncpa [#allocation4], 0
    // Predicated region
    $region2: #{forward_train.1} parent=1 // pred_check
      _
    $region3: #{forward_train.1} parent=1 // pred_check_branch
      %18 = sbr.rel (0) target = $region5
    $region4: #{forward_train.1} parent=1 // pred_region
      _
    $region5: #{forward_train.1} parent=1 // pred_fallthru
      _
    // Predicated region
    $region6: #{forward_train.1} parent=1 // pred_check
      _
    $region7: #{forward_train.1} parent=1 // pred_check_branch
      %20 = sbr.rel (0) target = $region9
    $region8: #{forward_train.1} parent=1 // pred_region
      _
    $region9: #{forward_train.1} parent=1 // pred_fallthru
      _
    // Predicated region
    $region10: #{forward_train.1} parent=1 // pred_check
      _
    $region11: #{forward_train.1} parent=1 // pred_check_branch
      %22 = sbr.rel (0) target = $region13
    $region12: #{forward_train.1} parent=1 // pred_region
      _
    $region13: #{forward_train.1} parent=1 // pred_fallthru
      _
    // Predicated region
    $region14: #{forward_train.1} parent=1 // pred_check
      _
    $region15: #{forward_train.1} parent=1 // pred_check_branch
      %24 = sbr.rel (0) target = $region17
    $region16: #{forward_train.1} parent=1 // pred_region
      _
    $region17: #{forward_train.1} parent=1 // pred_fallthru
      _
    // Predicated region
    $region18: #{forward_train.1} parent=1 // pred_check
      _
    $region19: #{forward_train.1} parent=1 // pred_check_branch
      %26 = sbr.rel (0) target = $region21
    $region20: #{forward_train.1} parent=1 // pred_region
      _
    $region21: #{forward_train.1} parent=1 // pred_fallthru
      _
    // Predicated region
    $region22: #{forward_train.1} parent=1 // pred_check
      _
    $region23: #{forward_train.1} parent=1 // pred_check_branch
      %28 = sbr.rel (0) target = $region25
    $region24: #{forward_train.1} parent=1 // pred_region
      _
    $region25: #{forward_train.1} parent=1 // pred_fallthru
      _
    // Predicated region
    $region26: #{forward_train.1} parent=1 // pred_check
      _
    $region27: #{forward_train.1} parent=1 // pred_check_branch
      %30 = sbr.rel (0) target = $region29
    $region28: #{forward_train.1} parent=1 // pred_region
      _
    $region29: #{forward_train.1} parent=1 // pred_fallthru
      _
    // Predicated region
    $region30: #{forward_train.1} parent=1 // pred_check
      _
    $region31: #{forward_train.1} parent=1 // pred_check_branch
      %32 = sbr.rel (0) target = $region33
    $region32: #{forward_train.1} parent=1 // pred_region
      _
    $region33: #{forward_train.1} parent=1 // pred_fallthru
      _
    // Predicated region
    $region34: #{forward_train.1} parent=1 // pred_check
      _
    $region35: #{forward_train.1} parent=1 // pred_check_branch
      %34 = sbr.rel (0) target = $region37
    $region36: #{forward_train.1} parent=1 // pred_region
      _
    $region37: #{forward_train.1} parent=1 // pred_fallthru
      _
    // Predicated region
    $region38: #{forward_train.1} parent=1 // pred_check
      _
    $region39: #{forward_train.1} parent=1 // pred_check_branch
      %36 = sbr.rel (0) target = $region41
    $region40: #{forward_train.1} parent=1 // pred_region
      _
    $region41: #{forward_train.1} parent=1 // pred_fallthru
      _
    // Predicated region
    $region42: #{forward_train.1} parent=1 // pred_check
      _
    $region43: #{forward_train.1} parent=1 // pred_check_branch
      %38 = sbr.rel (0) target = $region45
    $region44: #{forward_train.1} parent=1 // pred_region
      _
    $region45: #{forward_train.1} parent=1 // pred_fallthru
      _
    %p39 = scmp.eq.s32.totalorder 0, 0
    // Predicated region
    $region46: #{forward_train.1} parent=1 // pred_check
      %p40 = pneg %p39
    $region47: #{forward_train.1} parent=1 // pred_check_branch
      %42 = sbr.rel (%p40) target = $region49
    $region48: #{forward_train.1} parent=1 // pred_region
      %s43 = scalar_lea.smem [#allocation2], 0
      %44 = sst [smem:[%s43]] 0.0
    $region49: #{forward_train.1} parent=1 // pred_fallthru
      _
    %v45 = vld [vmem:[%s0] sm:$0xff]
    %v46 = vld [vmem:[%s0 + $0x8] sm:$0xff]
    %v47 = vld [vmem:[%s6] sm:$0x1]
    %48 = vset.pattern.permute.xlu0 0
    %49 = vperm.xlu0 %48, %v45
    %v50 = vpop.permute.xlu0 %49
    %51 = vset.pattern.permute.xlu0 0
    %52 = vperm.xlu0 %51, %v46
    %v53 = vpop.permute.xlu0 %52
    %v54 = vlaneseq
    %v55 = vshrl.u32 %v54, 7
    %v56 = vsub.s32 0, %v55
    %v57 = vrot.slane %v47, %v56
    %v58 = vand.u32 %v50, %v57
    %v59 = vand.u32 %v53, %v57
    %vm60 = vcmp.ne.s32.totalorder %v58, 0
    %vm61 = vcmp.ne.s32.totalorder %v59, 0
    %v62 = vsel %vm60, 1.0, -1.0
    %v63 = vsel %vm61, 1.0, -1.0
    %v64 = vld [vmem:[%s3] sm:$0xff]
    %v65 = vld [vmem:[%s3 + $0x8] sm:$0xff]
    %67 = vset.pattern.permute.xlu0 0
    %68 = vperm.xlu0 %67, %v64
    %v69 = vpop.permute.xlu0 %68
    %72 = vset.pattern.permute.xlu0 0
    %73 = vperm.xlu0 %72, %v65
    %v74 = vpop.permute.xlu0 %73
    %v76 = vmul.f32 %v69, %v62
    %v77 = vmul.f32 %v74, %v63
    %v78 = vld [vmem:[%s4] sm:$0xff]
    %v79 = vld [vmem:[%s4 + $0x8] sm:$0xff]
    %v80 = vld [vmem:[%s1] sm:$0xff]
    %v81 = vld [vmem:[%s1 + $0x8] sm:$0xff]
    %83 = vset.pattern.permute.xlu0 0
    %84 = vperm.xlu0 %83, %v78
    %v85 = vpop.permute.xlu0 %84
    %88 = vset.pattern.permute.xlu0 0
    %89 = vperm.xlu0 %88, %v79
    %v90 = vpop.permute.xlu0 %89
    %v92 = vmul.f32 %v85, %v80
    %v93 = vmul.f32 %v90, %v81
    %v94 = vadd.f32 %v76, %v92
    %v95 = vadd.f32 %v77, %v93
    %v96 = vld [vmem:[%s7] sm:$0xf]
    %v97 = vld [vmem:[%s2] sm:$0xff]
    %v98 = vld [vmem:[%s2 + $0x8] sm:$0xff]
    %v99 = vld [vmem:[%s8] sm:$0xff]
    %v100 = vld [vmem:[%s8 + $0x8] sm:$0xff]
    %v101 = vld [vmem:[%s8 + $0x10] sm:$0xff]
    %v102 = vld [vmem:[%s8 + $0x18] sm:$0xff]
    %vm103 = vcmask 261120
    %v105 = vsel %vm103, %v97, 0
    %v108 = vsel %vm103, %v98, 0
    %110 = vmatprep.subr.mxu0 0.0
    %111 = vmatpush1.msra.mxu0 %v99
    %112 = vmatprep.subr.mxu0 0.0
    %113 = vmatpush1.msra.mxu0 %v100
    %114 = vmatprep.subr.mxu0 0.0
    %115 = vmatpush1.msra.mxu0 %v101
    %116 = vmatprep.subr.mxu0 0.0
    %117 = vmatpush1.msra.mxu0 %v102
    %118 = vmatprep.subr.mxu0 0.0
    %119 = vmatpush1.msra.mxu0 0.0
    %120 = vmatprep.subr.mxu0 0.0
    %121 = vmatpush1.msra.mxu0 0.0
    %122 = vmatprep.subr.mxu0 0.0
    %123 = vmatpush1.msra.mxu0 0.0
    %124 = vmatprep.subr.mxu0 0.0
    %125 = vmatpush1.msra.mxu0 0.0
    %126 = vmatprep.subr.mxu0 0.0
    %127 = vmatpush1.msra.mxu0 0.0
    %128 = vmatprep.subr.mxu0 0.0
    %129 = vmatpush1.msra.mxu0 0.0
    %130 = vmatprep.subr.mxu0 0.0
    %131 = vmatpush1.msra.mxu0 0.0
    %132 = vmatprep.subr.mxu0 0.0
    %133 = vmatpush1.msra.mxu0 0.0
    %134 = vmatprep.subr.mxu0 0.0
    %135 = vmatpush1.msra.mxu0 0.0
    %136 = vmatprep.subr.mxu0 0.0
    %137 = vmatpush1.msra.mxu0 0.0
    %138 = vmatprep.subr.mxu0 0.0
    %139 = vmatpush1.msra.mxu0 0.0
    %140 = vmatprep.subr.mxu0 0.0
    %141 = vmatpush1.msra.mxu0 0.0
    %142 = vmatprep.subr.mxu0 0.0
    %143 = vmatpush1.msra.mxu0 0.0
    %144 = vmatprep.subr.mxu0 0.0
    %145 = vmatpush1.msra.mxu0 0.0
    %146 = vmatprep.subr.mxu0 0.0
    %147 = vmatpush1.msra.mxu0 0.0
    %148 = vmatprep.subr.mxu0 0.0
    %149 = vmatpush1.msra.mxu0 0.0
    %150 = vmatprep.subr.mxu0 0.0
    %151 = vmatpush1.msra.mxu0 0.0
    %152 = vmatprep.subr.mxu0 0.0
    %153 = vmatpush1.msra.mxu0 0.0
    %154 = vmatprep.subr.mxu0 0.0
    %155 = vmatpush1.msra.mxu0 0.0
    %156 = vmatprep.subr.mxu0 0.0
    %157 = vmatpush1.msra.mxu0 0.0
    %158 = vmatprep.subr.mxu0 0.0
    %159 = vmatpush1.msra.mxu0 0.0
    %160 = vmatprep.subr.mxu0 0.0
    %161 = vmatpush1.msra.mxu0 0.0
    %162 = vmatprep.subr.mxu0 0.0
    %163 = vmatpush1.msra.mxu0 0.0
    %164 = vmatprep.subr.mxu0 0.0
    %165 = vmatpush1.msra.mxu0 0.0
    %166 = vmatprep.subr.mxu0 0.0
    %167 = vmatpush1.msra.mxu0 0.0
    %168 = vmatprep.subr.mxu0 0.0
    %169 = vmatpush1.msra.mxu0 0.0
    %170 = vmatprep.subr.mxu0 0.0
    %171 = vmatpush1.msra.mxu0 0.0
    %172 = vmatprep.subr.mxu0 0.0
    %173 = vmatpush1.msra.mxu0 0.0
    %174 = vmatprep.mubr.f32.mxu0 0.0
    %175 = vmatmul.mubr.f32.gmra.mrb[0].mxu0 %v105
    %v176 = vpop.f32.mrb[0].mxu0
    %v177 = vadd.f32 0.0, %v176
    %v178 = vpop.f32.mrb[0].mxu0
    %179 = vmatprep.mubr.f32.mxu0 0.0
    %180 = vmatmul.mubr.f32.gmra.mrb[0].mxu0 %v108
    %v181 = vpop.f32.mrb[0].mxu0
    %v182 = vadd.f32 0.0, %v181
    %v183 = vpop.f32.mrb[0].mxu0
    %184 = vdwg.mxu0
    %vm185 = vcmask 31744
    %v187 = vsel %vm185, %v94, 0
    %v190 = vsel %vm185, %v95, 0
    %vm192 = vcmask 1043456
    %v194 = vsel %vm192, %v96, 0
    %196 = vmatprep.subr.mxu0 0.0
    %197 = vmatpush1.msra.mxu0 %v194
    %198 = vmatprep.subr.mxu0 0.0
    %199 = vmatpush1.msra.mxu0 0.0
    %200 = vmatprep.subr.mxu0 0.0
    %201 = vmatpush1.msra.mxu0 0.0
    %202 = vmatprep.subr.mxu0 0.0
    %203 = vmatpush1.msra.mxu0 0.0
    %204 = vmatprep.subr.mxu0 0.0
    %205 = vmatpush1.msra.mxu0 0.0
    %206 = vmatprep.subr.mxu0 0.0
    %207 = vmatpush1.msra.mxu0 0.0
    %208 = vmatprep.subr.mxu0 0.0
    %209 = vmatpush1.msra.mxu0 0.0
    %210 = vmatprep.subr.mxu0 0.0
    %211 = vmatpush1.msra.mxu0 0.0
    %212 = vmatprep.subr.mxu0 0.0
    %213 = vmatpush1.msra.mxu0 0.0
    %214 = vmatprep.subr.mxu0 0.0
    %215 = vmatpush1.msra.mxu0 0.0
    %216 = vmatprep.subr.mxu0 0.0
    %217 = vmatpush1.msra.mxu0 0.0
    %218 = vmatprep.subr.mxu0 0.0
    %219 = vmatpush1.msra.mxu0 0.0
    %220 = vmatprep.subr.mxu0 0.0
    %221 = vmatpush1.msra.mxu0 0.0
    %222 = vmatprep.subr.mxu0 0.0
    %223 = vmatpush1.msra.mxu0 0.0
    %224 = vmatprep.subr.mxu0 0.0
    %225 = vmatpush1.msra.mxu0 0.0
    %226 = vmatprep.subr.mxu0 0.0
    %227 = vmatpush1.msra.mxu0 0.0
    %228 = vmatprep.subr.mxu0 0.0
    %229 = vmatpush1.msra.mxu0 0.0
    %230 = vmatprep.subr.mxu0 0.0
    %231 = vmatpush1.msra.mxu0 0.0
    %232 = vmatprep.subr.mxu0 0.0
    %233 = vmatpush1.msra.mxu0 0.0
    %234 = vmatprep.subr.mxu0 0.0
    %235 = vmatpush1.msra.mxu0 0.0
    %236 = vmatprep.subr.mxu0 0.0
    %237 = vmatpush1.msra.mxu0 0.0
    %238 = vmatprep.subr.mxu0 0.0
    %239 = vmatpush1.msra.mxu0 0.0
    %240 = vmatprep.subr.mxu0 0.0
    %241 = vmatpush1.msra.mxu0 0.0
    %242 = vmatprep.subr.mxu0 0.0
    %243 = vmatpush1.msra.mxu0 0.0
    %244 = vmatprep.subr.mxu0 0.0
    %245 = vmatpush1.msra.mxu0 0.0
    %246 = vmatprep.subr.mxu0 0.0
    %247 = vmatpush1.msra.mxu0 0.0
    %248 = vmatprep.subr.mxu0 0.0
    %249 = vmatpush1.msra.mxu0 0.0
    %250 = vmatprep.subr.mxu0 0.0
    %251 = vmatpush1.msra.mxu0 0.0
    %252 = vmatprep.subr.mxu0 0.0
    %253 = vmatpush1.msra.mxu0 0.0
    %254 = vmatprep.subr.mxu0 0.0
    %255 = vmatpush1.msra.mxu0 0.0
    %256 = vmatprep.subr.mxu0 0.0
    %257 = vmatpush1.msra.mxu0 0.0
    %258 = vmatprep.subr.mxu0 0.0
    %259 = vmatpush1.msra.mxu0 0.0
    %260 = vmatprep.mubr.f32.mxu0 0.0
    %261 = vmatmul.mubr.f32.gmra.mrb[0].mxu0 %v187
    %v262 = vpop.f32.mrb[0].mxu0
    %v263 = vadd.f32 %v177, %v262
    %v264 = vpop.f32.mrb[0].mxu0
    %265 = vmatprep.mubr.f32.mxu0 0.0
    %266 = vmatmul.mubr.f32.gmra.mrb[0].mxu0 %v190
    %v267 = vpop.f32.mrb[0].mxu0
    %v268 = vadd.f32 %v182, %v267
    %v269 = vpop.f32.mrb[0].mxu0
    %270 = vdwg.mxu0
    %v271 = vld [vmem:[%s5] sm:$0xff]
    %v272 = vld [vmem:[%s5 + $0x8] sm:$0xff]
    %v273 = vadd.f32 %v263, %v271
    %v274 = vadd.f32 %v268, %v272
    %v275 = vmul.f32 %v273, %v273
    %v276 = vmul.f32 %v274, %v274
    %v277 = vmul.f32 %v273, %v275
    %v278 = vmul.f32 %v274, %v276
    %v279 = vmul.f32 %v277, 0.044715
    %v280 = vmul.f32 %v278, 0.044715
    %v281 = vadd.f32 %v273, %v279
    %v282 = vadd.f32 %v274, %v280
    %v283 = vmul.f32 %v281, 0.7978846
    %v284 = vmul.f32 %v282, 0.7978846
    %v285 = vtanh.pop %v283
    %v286 = vtanh.pop %v284
    %v287 = vadd.f32 %v285, 1.0
    %v288 = vadd.f32 %v286, 1.0
    %v289 = vmul.f32 %v287, 0.5
    %v290 = vmul.f32 %v288, 0.5
    %v291 = vmul.f32 %v273, %v289
    %v292 = vmul.f32 %v274, %v290
    %v293 = vld [vmem:[%s9] sm:$0xff]
    %v294 = vld [vmem:[%s9 + $0x8] sm:$0xff]
    %v295 = vld [vmem:[%s9 + $0x10] sm:$0xff]
    %v296 = vld [vmem:[%s9 + $0x18] sm:$0xff]
    %v297 = vld [vmem:[%s10] sm:$0x1]
    %v299 = vlaneseq
    %v300 = vshrl.u32 %v299, 7
    %v301 = vsub.s32 0, %v300
    %v302 = vrot.slane %v297, %v301
    %v305 = vsel %vm103, %v291, 0
    %v308 = vsel %vm103, %v292, 0
    %310 = vmatprep.subr.mxu0 0.0
    %311 = vmatpush1.msra.mxu0 %v293
    %312 = vmatprep.subr.mxu0 0.0
    %313 = vmatpush1.msra.mxu0 %v294
    %314 = vmatprep.subr.mxu0 0.0
    %315 = vmatpush1.msra.mxu0 %v295
    %316 = vmatprep.subr.mxu0 0.0
    %317 = vmatpush1.msra.mxu0 %v296
    %318 = vmatprep.subr.mxu0 0.0
    %319 = vmatpush1.msra.mxu0 0.0
    %320 = vmatprep.subr.mxu0 0.0
    %321 = vmatpush1.msra.mxu0 0.0
    %322 = vmatprep.subr.mxu0 0.0
    %323 = vmatpush1.msra.mxu0 0.0
    %324 = vmatprep.subr.mxu0 0.0
    %325 = vmatpush1.msra.mxu0 0.0
    %326 = vmatprep.subr.mxu0 0.0
    %327 = vmatpush1.msra.mxu0 0.0
    %328 = vmatprep.subr.mxu0 0.0
    %329 = vmatpush1.msra.mxu0 0.0
    %330 = vmatprep.subr.mxu0 0.0
    %331 = vmatpush1.msra.mxu0 0.0
    %332 = vmatprep.subr.mxu0 0.0
    %333 = vmatpush1.msra.mxu0 0.0
    %334 = vmatprep.subr.mxu0 0.0
    %335 = vmatpush1.msra.mxu0 0.0
    %336 = vmatprep.subr.mxu0 0.0
    %337 = vmatpush1.msra.mxu0 0.0
    %338 = vmatprep.subr.mxu0 0.0
    %339 = vmatpush1.msra.mxu0 0.0
    %340 = vmatprep.subr.mxu0 0.0
    %341 = vmatpush1.msra.mxu0 0.0
    %342 = vmatprep.subr.mxu0 0.0
    %343 = vmatpush1.msra.mxu0 0.0
    %344 = vmatprep.subr.mxu0 0.0
    %345 = vmatpush1.msra.mxu0 0.0
    %346 = vmatprep.subr.mxu0 0.0
    %347 = vmatpush1.msra.mxu0 0.0
    %348 = vmatprep.subr.mxu0 0.0
    %349 = vmatpush1.msra.mxu0 0.0
    %350 = vmatprep.subr.mxu0 0.0
    %351 = vmatpush1.msra.mxu0 0.0
    %352 = vmatprep.subr.mxu0 0.0
    %353 = vmatpush1.msra.mxu0 0.0
    %354 = vmatprep.subr.mxu0 0.0
    %355 = vmatpush1.msra.mxu0 0.0
    %356 = vmatprep.subr.mxu0 0.0
    %357 = vmatpush1.msra.mxu0 0.0
    %358 = vmatprep.subr.mxu0 0.0
    %359 = vmatpush1.msra.mxu0 0.0
    %360 = vmatprep.subr.mxu0 0.0
    %361 = vmatpush1.msra.mxu0 0.0
    %362 = vmatprep.subr.mxu0 0.0
    %363 = vmatpush1.msra.mxu0 0.0
    %364 = vmatprep.subr.mxu0 0.0
    %365 = vmatpush1.msra.mxu0 0.0
    %366 = vmatprep.subr.mxu0 0.0
    %367 = vmatpush1.msra.mxu0 0.0
    %368 = vmatprep.subr.mxu0 0.0
    %369 = vmatpush1.msra.mxu0 0.0
    %370 = vmatprep.subr.mxu0 0.0
    %371 = vmatpush1.msra.mxu0 0.0
    %372 = vmatprep.subr.mxu0 0.0
    %373 = vmatpush1.msra.mxu0 0.0
    %374 = vmatprep.mubr.f32.mxu0 0.0
    %375 = vmatmul.mubr.f32.gmra.mrb[0].mxu0 %v305
    %v376 = vpop.f32.mrb[0].mxu0
    %v377 = vadd.f32 %v302, %v376
    %v378 = vpop.f32.mrb[0].mxu0
    %379 = vmatprep.mubr.f32.mxu0 0.0
    %380 = vmatmul.mubr.f32.gmra.mrb[0].mxu0 %v308
    %v381 = vpop.f32.mrb[0].mxu0
    %v382 = vadd.f32 %v302, %v381
    %v383 = vpop.f32.mrb[0].mxu0
    %384 = vdwg.mxu0
    %vm385 = vcmp.ne.s32.totalorder %v45, 4294967196
    %vm386 = vcmp.ne.s32.totalorder %v46, 4294967196
    %v387 = vsel %vm385, 1, 0
    %v388 = vsel %vm386, 1, 0
    %v389 = vcvt.s32.f32 %v387
    %v390 = vcvt.s32.f32 %v388
    %v391 = vsub.f32 %v377, %v62
    %v392 = vsub.f32 %v382, %v63
    %394 = vset.pattern.permute.xlu0 0
    %395 = vperm.xlu0 %394, %v389
    %v396 = vpop.permute.xlu0 %395
    %399 = vset.pattern.permute.xlu0 0
    %400 = vperm.xlu0 %399, %v390
    %v401 = vpop.permute.xlu0 %400
    %v403 = vmul.f32 %v391, %v396
    %v404 = vmul.f32 %v392, %v401
    %s405 = sld [smem:[#allocation2]]
    %v406 = vmul.f32 %v403, %v403
    %v407 = vmul.f32 %v404, %v404
    %v408 = vsel %vm185, %v406, 0.0
    %v409 = vsel %vm185, %v407, 0.0
    %v410 = vadd.f32 %v408, %v409
    %411 = vadd.xlane.f32.xlu0 %v410
    %v412 = vpop.xlane.xlu0 %411
    %v413 = vrot.slane %v412, 4
    %v414 = vadd.f32 %v412, %v413
    %v415 = vrot.slane %v414, 2
    %v416 = vadd.f32 %v414, %v415
    %v417 = vrot.slane %v416, 1
    %v418 = vadd.f32 %v416, %v417
    %s419 = vtos %v418
    %s420 = sadd.f32 %s405, %s419
    %s421 = scalar_lea.smem [#allocation2], 0
    %422 = sst [smem:[%s421]] %s420
    // Predicated region
    $region50: #{forward_train.1} parent=1 // pred_check
      %p423 = pneg %p39
    $region51: #{forward_train.1} parent=1 // pred_check_branch
      %425 = sbr.rel (%p423) target = $region53
    $region52: #{forward_train.1} parent=1 // pred_region
      %s426 = sld [smem:[#allocation2]]
      %s427 = scalar_lea.smem [#allocation3], 0
      %428 = sst [smem:[%s427]] %s426
    $region53: #{forward_train.1} parent=1 // pred_fallthru
      _
    // Predicated region
    $region54: #{forward_train.1} parent=1 // pred_check
      _
    $region55: #{forward_train.1} parent=1 // pred_check_branch
      %430 = sbr.rel (0) target = $region57
    $region56: #{forward_train.1} parent=1 // pred_region
      %s432 = ssub.s32 16, 16
      %433 = vsyncadd [#allocation4], %s432
      %436 = dma.smem_to_hbm [#allocation3], 16, %s11, [#allocation4]
    $region57: #{forward_train.1} parent=1 // pred_fallthru
      _
    // Predicated region
    $region58: #{forward_train.1} parent=1 // pred_check
      _
    $region59: #{forward_train.1} parent=1 // pred_check_branch
      %438 = sbr.rel (0) target = $region61
    $region60: #{forward_train.1} parent=1 // pred_region
      %439 = dma.done [#allocation4], 16
    $region61: #{forward_train.1} parent=1 // pred_fallthru
      _
    %440 = sfence
    %441 = vsyncpa [#allocation4], 1

</llo_original>
